<compile_context>
chip_gen: v5e
topology: v5e:2x2
jax: 0.10.0
libtpu: 0.0.40
codegen_flags: <defaults>
</compile_context>

<pallas_src>
import functools

import jax
import jax.numpy as jnp
from jax.experimental import pallas as pl
from jax.experimental.pallas import tpu as pltpu


def _round_up(x: int, m: int) -> int:
    return ((x + m - 1) // m) * m


def _vmem_capacity_bytes() -> int:
    """Generation-aware VMEM capacity (128 MiB v5e/v6e, 64 MiB per-TC v7x)."""
    try:
        return int(pltpu.get_tpu_info().vmem_capacity_bytes)
    except Exception:
        return 64 * (1 << 20)  # conservative fallback: fits every generation


# ---------------------------------------------------------------------------
# Kernels
# ---------------------------------------------------------------------------
def _mlp_fused_kernel(x_ref, w1_ref, b1_ref, w2_ref, b2_ref, o_ref, *,
                      hid_chunk: int):
    """Weights fully VMEM-resident; hidden dim chunked to bound intermediates."""
    hid = w1_ref.shape[1]
    acc = jnp.zeros((x_ref.shape[0], w2_ref.shape[1]), jnp.float32)
    for k0 in range(0, hid, hid_chunk):
        kc = min(hid_chunk, hid - k0)
        # layer 1: MXU matmul (bf16 in, f32 accumulate), bias + ReLU in f32
        h = jnp.dot(x_ref[...], w1_ref[:, k0:k0 + kc],
                    preferred_element_type=jnp.float32)
        h = jnp.maximum(h + b1_ref[:, k0:k0 + kc], 0.0)
        # layer 2 partial product for this hidden slab (cast only at dot input)
        acc = acc + jnp.dot(h.astype(w2_ref.dtype), w2_ref[k0:k0 + kc, :],
                            preferred_element_type=jnp.float32)
    o_ref[...] = (acc + b2_ref[...]).astype(o_ref.dtype)


def _mlp_stream_kernel(x_ref, w1_ref, b1_ref, w2_ref, b2_ref, o_ref, acc_ref):
    """Weight-streaming fallback: hidden dim is an 'arbitrary' grid axis."""
    k = pl.program_id(1)

    @pl.when(k == 0)
    def _():
        acc_ref[...] = jnp.zeros_like(acc_ref)

    # ReLU per hidden slab is exact: layer-1 contraction (over in_dim) is full.
    h = jnp.dot(x_ref[...], w1_ref[...], preferred_element_type=jnp.float32)
    h = jnp.maximum(h + b1_ref[...], 0.0)
    acc_ref[...] += jnp.dot(h.astype(w2_ref.dtype), w2_ref[...],
                            preferred_element_type=jnp.float32)

    @pl.when(k == pl.num_programs(1) - 1)
    def _():
        o_ref[...] = (acc_ref[...] + b2_ref[...]).astype(o_ref.dtype)


# ---------------------------------------------------------------------------
# Wrapper
# ---------------------------------------------------------------------------
def network_forward(x, w1, b1, w2, b2, *, matmul_dtype=jnp.bfloat16,
                    out_dtype=jnp.float32, tm_max=512, force_stream=False):
    """Fused 2-layer MLP forward as a batch-tiled Pallas TPU kernel."""
    batch, in_dim = x.shape
    hidden = w1.shape[1]
    out_dim = w2.shape[1]

    # ---- hardware-friendly padded shapes --------------------------------
    in_p = _round_up(in_dim, 128)
    hid_p = _round_up(hidden, 128)
    out_p = _round_up(out_dim, 128)
    b8 = _round_up(batch, 8)

    itm = jnp.dtype(matmul_dtype).itemsize
    otm = jnp.dtype(out_dtype).itemsize

    # ---- generation-aware VMEM budget (headroom for Mosaic scratch) -----
    vmem_cap = _vmem_capacity_bytes()
    vmem_limit = int(min(vmem_cap - (8 << 20), (vmem_cap * 7) // 8))
    plan_budget = vmem_limit - (4 << 20)

    hid_chunk = min(hid_p, 512)

    # Estimates include Pallas's default double-buffering of EVERY input,
    # even those with constant index maps.
    def fused_vmem(tm):
        weights = 2 * (in_p * hid_p + hid_p * out_p) * itm
        biases = 2 * (hid_p + out_p) * 4
        x_tiles = 2 * tm * in_p * itm
        o_tiles = 2 * tm * out_p * otm
        interm = tm * hid_chunk * 4 + tm * out_p * 4
        return weights + biases + x_tiles + o_tiles + interm

    def stream_vmem(tm, th):
        tiles = 2 * (tm * in_p * itm + in_p * th * itm + th * out_p * itm)
        biases = 2 * (th + out_p) * 4
        o_tiles = 2 * tm * out_p * otm
        interm = tm * th * 4 + tm * out_p * 4  # h intermediate + acc scratch
        return tiles + biases + o_tiles + interm

    # ---- batch tile: large, aligned, and >=2 grid steps when batch allows
    tm = min(tm_max, b8)
    if b8 >= 256:
        # guarantee >=2 grid iterations so the "parallel" batch axis can
        # shard across v7x's two TensorCores
        tm = min(tm, _round_up(pl.cdiv(b8, 2), 128))
    tm = max(8, _round_up(tm, 8))
    tm_floor = 128 if b8 >= 128 else 8   # keep the MXU reasonably filled

    use_stream = bool(force_stream)
    if not use_stream:
        t = tm
        while fused_vmem(t) > plan_budget and t > tm_floor:
            t = max(tm_floor, _round_up(t // 2, 8))
        if fused_vmem(t) > plan_budget:
            use_stream = True          # resident weights do not fit -> stream
        else:
            tm = t

    # ---- zero-pad operands only when needed (zeros are benign) ----------
    def pad2(a, rows, cols, dtype):
        out = a if a.dtype == dtype else a.astype(dtype)
        r, c = a.shape
        if (r, c) != (rows, cols):
            out = jnp.pad(out, ((0, rows - r), (0, cols - c)))
        return out

    if not use_stream:
        xp = pad2(x, b8, in_p, matmul_dtype)
        w1p = pad2(w1, in_p, hid_p, matmul_dtype)
        w2p = pad2(w2, hid_p, out_p, matmul_dtype)
        b1p = pad2(b1, 1, hid_p, jnp.float32)
        b2p = pad2(b2, 1, out_p, jnp.float32)

        grid = (pl.cdiv(b8, tm),)
        flops = 2 * b8 * (in_p * hid_p + hid_p * out_p)
        bytes_accessed = (xp.size * itm + (w1p.size + w2p.size) * itm
                          + (hid_p + out_p) * 4 + b8 * out_p * otm)

        out_padded = pl.pallas_call(
            functools.partial(_mlp_fused_kernel, hid_chunk=hid_chunk),
            out_shape=jax.ShapeDtypeStruct((b8, out_p), out_dtype),
            grid=grid,
            in_specs=[
                pl.BlockSpec((tm, in_p), lambda i: (i, 0)),      # x: batch-tiled
                pl.BlockSpec((in_p, hid_p), lambda i: (0, 0)),   # W1: resident
                pl.BlockSpec((1, hid_p), lambda i: (0, 0)),      # b1: resident
                pl.BlockSpec((hid_p, out_p), lambda i: (0, 0)),  # W2: resident
                pl.BlockSpec((1, out_p), lambda i: (0, 0)),      # b2: resident
            ],
            out_specs=pl.BlockSpec((tm, out_p), lambda i: (i, 0)),
            compiler_params=pltpu.CompilerParams(
                dimension_semantics=("parallel",),
                vmem_limit_bytes=vmem_limit),
            cost_estimate=pl.CostEstimate(
                flops=flops, transcendentals=0,
                bytes_accessed=bytes_accessed),
        )(xp, w1p, b1p, w2p, b2p)
    else:
        # ------ weight-streaming fallback: hidden dim on the grid --------
        th = min(hid_p, 512)
        tm_s = tm
        while (stream_vmem(tm_s, th) > plan_budget
               and (th > 128 or tm_s > tm_floor)):
            if th > 128:
                th = max(128, _round_up(th // 2, 128))
            else:
                tm_s = max(tm_floor, _round_up(tm_s // 2, 8))
        hid_pp = _round_up(hid_p, th)   # th divides hid_pp; pad is zeros

        xp = pad2(x, b8, in_p, matmul_dtype)
        w1p = pad2(w1, in_p, hid_pp, matmul_dtype)
        w2p = pad2(w2, hid_pp, out_p, matmul_dtype)
        b1p = pad2(b1, 1, hid_pp, jnp.float32)
        b2p = pad2(b2, 1, out_p, jnp.float32)

        grid = (pl.cdiv(b8, tm_s), hid_pp // th)
        flops = 2 * b8 * (in_p * hid_pp + hid_pp * out_p)
        bytes_accessed = (xp.size * itm
                          + grid[0] * (w1p.size + w2p.size) * itm
                          + (hid_pp + out_p) * 4 + b8 * out_p * otm)

        out_padded = pl.pallas_call(
            _mlp_stream_kernel,
            out_shape=jax.ShapeDtypeStruct((b8, out_p), out_dtype),
            grid=grid,
            in_specs=[
                pl.BlockSpec((tm_s, in_p), lambda i, k: (i, 0)),
                pl.BlockSpec((in_p, th), lambda i, k: (0, k)),
                pl.BlockSpec((1, th), lambda i, k: (0, k)),
                pl.BlockSpec((th, out_p), lambda i, k: (k, 0)),
                pl.BlockSpec((1, out_p), lambda i, k: (0, 0)),
            ],
            out_specs=pl.BlockSpec((tm_s, out_p), lambda i, k: (i, 0)),
            scratch_shapes=[pltpu.VMEM((tm_s, out_p), jnp.float32)],
            compiler_params=pltpu.CompilerParams(
                dimension_semantics=("parallel", "arbitrary"),
                vmem_limit_bytes=vmem_limit),
            cost_estimate=pl.CostEstimate(
                flops=flops, transcendentals=0,
                bytes_accessed=bytes_accessed),
        )(xp, w1p, b1p, w2p, b2p)

    if out_padded.shape == (batch, out_dim):
        return out_padded
    return out_padded[:batch, :out_dim]


def _reference(x, w1, b1, w2, b2, matmul_dtype=jnp.bfloat16):
    # same mixed-precision recipe as the kernel: bf16 matmul inputs,
    # f32 accumulation, f32 bias/ReLU.
    h = jnp.dot(x.astype(matmul_dtype), w1.astype(matmul_dtype),
                preferred_element_type=jnp.float32) + b1
    h = jnp.maximum(h, 0.0)
    y = jnp.dot(h.astype(matmul_dtype), w2.astype(matmul_dtype),
                preferred_element_type=jnp.float32) + b2
    return y


if __name__ == "__main__":
    key = jax.random.PRNGKey(0)
    k_x, k_w1, k_b1, k_w2, k_b2 = jax.random.split(key, 5)

    batch, in_dim, hidden, out_dim = 2, 32, 64, 16

    x = jax.random.normal(k_x, (batch, in_dim), dtype=jnp.float32)
    # deterministic parameter init (synthetic weights, not a checkpoint)
    w1 = jax.random.normal(k_w1, (in_dim, hidden), dtype=jnp.float32) * 0.1
    b1 = jax.random.normal(k_b1, (1, hidden), dtype=jnp.float32) * 0.01
    w2 = jax.random.normal(k_w2, (hidden, out_dim), dtype=jnp.float32) * 0.1
    b2 = jax.random.normal(k_b2, (1, out_dim), dtype=jnp.float32) * 0.01

    ref = _reference(x, w1, b1, w2, b2)

    # primary fused (weights-resident) path
    out = network_forward(x, w1, b1, w2, b2)
    jax.block_until_ready(out)
    assert out.shape == (batch, out_dim)
    assert jnp.allclose(out, ref, atol=1e-4, rtol=1e-4), (
        f"fused path max abs err {jnp.max(jnp.abs(out - ref))}")

    # weight-streaming fallback path (exercised explicitly for coverage)
    out_s = network_forward(x, w1, b1, w2, b2, force_stream=True)
    jax.block_until_ready(out_s)
    assert out_s.shape == (batch, out_dim)
    assert jnp.allclose(out_s, ref, atol=1e-4, rtol=1e-4), (
        f"stream path max abs err {jnp.max(jnp.abs(out_s - ref))}")

    print("KERNEL_OK")
</pallas_src>

<mosaic_0001>
module attributes {stable_mosaic.version = 11 : i64} {
  func.func @_mlp_fused_kernel(%arg0: i32, %arg1: memref<8x128xbf16, #tpu.memory_space<vmem>>, %arg2: memref<128x128xbf16, #tpu.memory_space<vmem>>, %arg3: memref<1x128xf32, #tpu.memory_space<vmem>>, %arg4: memref<128x128xbf16, #tpu.memory_space<vmem>>, %arg5: memref<1x128xf32, #tpu.memory_space<vmem>>, %arg6: memref<8x128xf32, #tpu.memory_space<vmem>>) attributes {dimension_semantics = [#tpu.dimension_semantics<parallel>], iteration_bounds = array<i64: 1>, scalar_prefetch = 0 : i64, scratch_operands = 0 : i64, tpu.core_type = #tpu.core_type<tc>, window_params = [{transform_indices = @transform_0, window_bounds = array<i64: 8, 128>}, {pipeline_mode = #tpu.pipeline_mode<synchronous>, transform_indices = @transform_1, window_bounds = array<i64: 128, 128>}, {pipeline_mode = #tpu.pipeline_mode<synchronous>, transform_indices = @transform_2, window_bounds = array<i64: 1, 128>}, {pipeline_mode = #tpu.pipeline_mode<synchronous>, transform_indices = @transform_3, window_bounds = array<i64: 128, 128>}, {pipeline_mode = #tpu.pipeline_mode<synchronous>, transform_indices = @transform_4, window_bounds = array<i64: 1, 128>}, {transform_indices = @transform_5, window_bounds = array<i64: 8, 128>}]} {
    %cst = arith.constant 0.000000e+00 : f32
    %0 = vector.broadcast %cst : f32 to vector<8x128xf32>
    %c0 = arith.constant 0 : index
    %c0_0 = arith.constant 0 : index
    %1 = vector.load %arg1[%c0, %c0_0] : memref<8x128xbf16, #tpu.memory_space<vmem>>, vector<8x128xbf16>
    %c0_1 = arith.constant 0 : index
    %c0_2 = arith.constant 0 : index
    %2 = vector.load %arg2[%c0_1, %c0_2] : memref<128x128xbf16, #tpu.memory_space<vmem>>, vector<128x128xbf16>
    %cst_3 = arith.constant dense<0.000000e+00> : vector<8x128xf32>
    %3 = tpu.matmul %1, %2, %cst_3 {dimension_numbers = #tpu.dot_dimension_numbers<[1], [0], [0], [1], [0, 0, 1, 1], [], []>} : vector<8x128xbf16>, vector<128x128xbf16>, vector<8x128xf32> -> vector<8x128xf32>
    %c0_4 = arith.constant 0 : index
    %c0_5 = arith.constant 0 : index
    %4 = vector.load %arg3[%c0_4, %c0_5] : memref<1x128xf32, #tpu.memory_space<vmem>>, vector<1x128xf32>
    %5 = vector.broadcast %4 : vector<1x128xf32> to vector<8x128xf32>
    %6 = arith.addf %3, %5 : vector<8x128xf32>
    %cst_6 = arith.constant 0.000000e+00 : f32
    %7 = vector.broadcast %cst_6 : f32 to vector<8x128xf32>
    %8 = arith.maximumf %6, %7 : vector<8x128xf32>
    %9 = arith.truncf %8 : vector<8x128xf32> to vector<8x128xbf16>
    %c0_7 = arith.constant 0 : index
    %c0_8 = arith.constant 0 : index
    %10 = vector.load %arg4[%c0_7, %c0_8] : memref<128x128xbf16, #tpu.memory_space<vmem>>, vector<128x128xbf16>
    %cst_9 = arith.constant dense<0.000000e+00> : vector<8x128xf32>
    %11 = tpu.matmul %9, %10, %cst_9 {dimension_numbers = #tpu.dot_dimension_numbers<[1], [0], [0], [1], [0, 0, 1, 1], [], []>} : vector<8x128xbf16>, vector<128x128xbf16>, vector<8x128xf32> -> vector<8x128xf32>
    %12 = arith.addf %0, %11 : vector<8x128xf32>
    %c0_10 = arith.constant 0 : index
    %c0_11 = arith.constant 0 : index
    %13 = vector.load %arg5[%c0_10, %c0_11] : memref<1x128xf32, #tpu.memory_space<vmem>>, vector<1x128xf32>
    %14 = vector.broadcast %13 : vector<1x128xf32> to vector<8x128xf32>
    %15 = arith.addf %12, %14 : vector<8x128xf32>
    %c0_12 = arith.constant 0 : index
    %c0_13 = arith.constant 0 : index
    %16 = vector.load %arg6[%c0_12, %c0_13] : memref<8x128xf32, #tpu.memory_space<vmem>>, vector<8x128xf32>
    tpu.vector_store %arg6[%c0_12, %c0_13], %15 {strides = array<i32>} : memref<8x128xf32, #tpu.memory_space<vmem>>, vector<8x128xf32>,
    return
  }
  func.func @transform_0(%arg0: i32) -> (i32, i32) {
    %c0_i32 = arith.constant 0 : i32
    %c0_i32_0 = arith.constant 0 : i32
    return %arg0, %c0_i32 : i32, i32
  }
  func.func @transform_1(%arg0: i32) -> (i32, i32) {
    %c0_i32 = arith.constant 0 : i32
    %c0_i32_0 = arith.constant 0 : i32
    %c0_i32_1 = arith.constant 0 : i32
    return %c0_i32, %c0_i32_0 : i32, i32
  }
  func.func @transform_2(%arg0: i32) -> (i32, i32) {
    %c0_i32 = arith.constant 0 : i32
    %c0_i32_0 = arith.constant 0 : i32
    %c0_i32_1 = arith.constant 0 : i32
    return %c0_i32, %c0_i32_0 : i32, i32
  }
  func.func @transform_3(%arg0: i32) -> (i32, i32) {
    %c0_i32 = arith.constant 0 : i32
    %c0_i32_0 = arith.constant 0 : i32
    %c0_i32_1 = arith.constant 0 : i32
    return %c0_i32, %c0_i32_0 : i32, i32
  }
  func.func @transform_4(%arg0: i32) -> (i32, i32) {
    %c0_i32 = arith.constant 0 : i32
    %c0_i32_0 = arith.constant 0 : i32
    %c0_i32_1 = arith.constant 0 : i32
    return %c0_i32, %c0_i32_0 : i32, i32
  }
  func.func @transform_5(%arg0: i32) -> (i32, i32) {
    %c0_i32 = arith.constant 0 : i32
    %c0_i32_0 = arith.constant 0 : i32
    return %arg0, %c0_i32 : i32, i32
  }
}

</mosaic_0001>

<llo_original>
// kernel: tpu_custom_call.1
$region0: #{tpu_custom_call.1}
  #allocation0 [shape = 'u32[]', space=smem, size = 0x4, offset = 0x4, fixed_abs, tag = 'smem constant byte address 0x4 - core index']
  #allocation1 [shape = 'u32[72,128]{1,0:T(1,128)}', space=vmem, size = 0x9000, scoped, tag = 'internal scratch']
  %s0 = inlined_call_operand.hbm [shape: bf16[8,128], index: 0, kind: input, shape index: {}]
  %s1 = inlined_call_operand.hbm [shape: bf16[128,128], index: 1, kind: input, shape index: {}]
  %s2 = inlined_call_operand.vmem [shape: f32[1,128], index: 2, kind: input, shape index: {}]
  %s3 = inlined_call_operand.hbm [shape: bf16[128,128], index: 3, kind: input, shape index: {}]
  %s4 = inlined_call_operand.vmem [shape: f32[1,128], index: 4, kind: input, shape index: {}]
  %s5 = inlined_call_operand.hbm [shape: f32[8,128], index: 5, kind: output, shape index: {}]
  %s6 = sld [smem:[#allocation0]]
  $region42: #{tpu_custom_call.1} parent=0
    _
  %s8 = ssub.s32 1, %s6
  %s9 = scalar_select 0, %s8, %s6
  $region1: #{tpu_custom_call.1} parent=0
    #allocation2 [shape = 'u8[2048]{0}', space=vmem, size = 0x800, scoped, tag = 'input window, operand 0, single buffered']
    #allocation3 [shape = 's32[1]{0}', space=sflag, size = 0x4, scoped, tag = 'scoped memory for tpu_custom_call.1']
    #allocation4 [shape = 's32[1]{0}', space=sflag, size = 0x4, scoped, tag = 'scoped memory for tpu_custom_call.1']
    #allocation5 [shape = 'u8[32768]{0}', space=vmem, size = 0x8000, scoped, tag = 'input window, operand 1, single buffered']
    #allocation6 [shape = 's32[1]{0}', space=sflag, size = 0x4, scoped, tag = 'scoped memory for tpu_custom_call.1']
    #allocation7 [shape = 'u8[32768]{0}', space=vmem, size = 0x8000, scoped, tag = 'input window, operand 3, single buffered']
    #allocation8 [shape = 'u8[4096]{0}', space=vmem, size = 0x1000, scoped, tag = 'output window, operand 0, single buffered']
    %10 = vsyncpa [#allocation3], 0
    %11 = vsyncpa [#allocation6], 0
    %12 = vsyncpa [#allocation4], 0
    // Predicated region
    $region2: #{tpu_custom_call.1} parent=1 // pred_check
      _
    $region3: #{tpu_custom_call.1} parent=1 // pred_check_branch
      %14 = sbr.rel (0) target = $region5
    $region4: #{tpu_custom_call.1} parent=1 // pred_region
      %16 = vsyncadd [#allocation3], 0
      %s18 = sshll.u32 %s0, 4
      %s19 = int_to_ptr.hbm [resolvable:$true] %s18
      %s20 = sshll.u32 [#allocation2], 4
      %s21 = int_to_ptr.vmem [resolvable:$true] %s20
      %23 = dma.hbm_to_vmem [thread:$0]  %s19, 64, %s21, [#allocation3]
    $region5: #{tpu_custom_call.1} parent=1 // pred_fallthru
      _
    // Predicated region
    $region6: #{tpu_custom_call.1} parent=1 // pred_check
      _
    $region7: #{tpu_custom_call.1} parent=1 // pred_check_branch
      %25 = sbr.rel (0) target = $region9
    $region8: #{tpu_custom_call.1} parent=1 // pred_region
      %27 = vsyncadd [#allocation6], 0
      %s28 = sshll.u32 %s1, 4
      %s29 = int_to_ptr.hbm [resolvable:$true] %s28
      %s30 = sshll.u32 [#allocation5], 4
      %s31 = int_to_ptr.vmem [resolvable:$true] %s30
      %36 = dma.hbm_to_vmem [thread:$0]  %s29, 1024, %s31, [#allocation6], 64, 64, 4
    $region9: #{tpu_custom_call.1} parent=1 // pred_fallthru
      _
    // Predicated region
    $region10: #{tpu_custom_call.1} parent=1 // pred_check
      _
    $region11: #{tpu_custom_call.1} parent=1 // pred_check_branch
      %38 = sbr.rel (0) target = $region13
    $region12: #{tpu_custom_call.1} parent=1 // pred_region
      _
    $region13: #{tpu_custom_call.1} parent=1 // pred_fallthru
      _
    // Predicated region
    $region14: #{tpu_custom_call.1} parent=1 // pred_check
      _
    $region15: #{tpu_custom_call.1} parent=1 // pred_check_branch
      %40 = sbr.rel (0) target = $region17
    $region16: #{tpu_custom_call.1} parent=1 // pred_region
      %42 = vsyncadd [#allocation6], 0
      %s43 = sshll.u32 %s3, 4
      %s44 = int_to_ptr.hbm [resolvable:$true] %s43
      %s45 = sshll.u32 [#allocation7], 4
      %s46 = int_to_ptr.vmem [resolvable:$true] %s45
      %51 = dma.hbm_to_vmem [thread:$0]  %s44, 1024, %s46, [#allocation6], 64, 64, 4
    $region17: #{tpu_custom_call.1} parent=1 // pred_fallthru
      _
    // Predicated region
    $region18: #{tpu_custom_call.1} parent=1 // pred_check
      _
    $region19: #{tpu_custom_call.1} parent=1 // pred_check_branch
      %53 = sbr.rel (0) target = $region21
    $region20: #{tpu_custom_call.1} parent=1 // pred_region
      _
    $region21: #{tpu_custom_call.1} parent=1 // pred_fallthru
      _
    // Predicated region
    $region22: #{tpu_custom_call.1} parent=1 // pred_check
      _
    $region23: #{tpu_custom_call.1} parent=1 // pred_check_branch
      %55 = sbr.rel (0) target = $region25
    $region24: #{tpu_custom_call.1} parent=1 // pred_region
      %57 = dma.done [#allocation3], 64
    $region25: #{tpu_custom_call.1} parent=1 // pred_fallthru
      _
    // Predicated region
    $region26: #{tpu_custom_call.1} parent=1 // pred_check
      _
    $region27: #{tpu_custom_call.1} parent=1 // pred_check_branch
      %59 = sbr.rel (0) target = $region29
    $region28: #{tpu_custom_call.1} parent=1 // pred_region
      %61 = dma.done [#allocation6], 1024
    $region29: #{tpu_custom_call.1} parent=1 // pred_fallthru
      _
    // Predicated region
    $region30: #{tpu_custom_call.1} parent=1 // pred_check
      _
    $region31: #{tpu_custom_call.1} parent=1 // pred_check_branch
      %63 = sbr.rel (0) target = $region33
    $region32: #{tpu_custom_call.1} parent=1 // pred_region
      %65 = dma.done [#allocation6], 1024
    $region33: #{tpu_custom_call.1} parent=1 // pred_fallthru
      _
    %v66 = vld [vmem:[#allocation2] sm:$0xf]
    %v67 = vld [vmem:[#allocation5] sm:$0xf]
    %v68 = vld [vmem:[#allocation5 + $0x4] sm:$0xf]
    %v69 = vld [vmem:[#allocation5 + $0x8] sm:$0xf]
    %v70 = vld [vmem:[#allocation5 + $0xc] sm:$0xf]
    %v71 = vld [vmem:[#allocation5 + $0x10] sm:$0xf]
    %v72 = vld [vmem:[#allocation5 + $0x14] sm:$0xf]
    %v73 = vld [vmem:[#allocation5 + $0x18] sm:$0xf]
    %v74 = vld [vmem:[#allocation5 + $0x1c] sm:$0xf]
    %v75 = vld [vmem:[#allocation5 + $0x20] sm:$0xf]
    %v76 = vld [vmem:[#allocation5 + $0x24] sm:$0xf]
    %v77 = vld [vmem:[#allocation5 + $0x28] sm:$0xf]
    %v78 = vld [vmem:[#allocation5 + $0x2c] sm:$0xf]
    %v79 = vld [vmem:[#allocation5 + $0x30] sm:$0xf]
    %v80 = vld [vmem:[#allocation5 + $0x34] sm:$0xf]
    %v81 = vld [vmem:[#allocation5 + $0x38] sm:$0xf]
    %v82 = vld [vmem:[#allocation5 + $0x3c] sm:$0xf]
    %v83 = vld [vmem:[%s2] sm:$0x1]
    %v85 = vperm.slane %v83, 0
    %v103 = vunpack.c.l.b16 %v67
    %v104 = vunpack.c.l.b16 %v68
    %v105 = vunpack.c.l.b16 %v69
    %v106 = vunpack.c.l.b16 %v70
    %v107 = vunpack.c.l.b16 %v71
    %v108 = vunpack.c.l.b16 %v72
    %v109 = vunpack.c.l.b16 %v73
    %v110 = vunpack.c.l.b16 %v74
    %v111 = vunpack.c.l.b16 %v75
    %v112 = vunpack.c.l.b16 %v76
    %v113 = vunpack.c.l.b16 %v77
    %v114 = vunpack.c.l.b16 %v78
    %v115 = vunpack.c.l.b16 %v79
    %v116 = vunpack.c.l.b16 %v80
    %v117 = vunpack.c.l.b16 %v81
    %v118 = vunpack.c.l.b16 %v82
    %v119 = vpack.c.b16 %v104, %v103
    %v120 = vpack.c.b16 %v106, %v105
    %v121 = vpack.c.b16 %v108, %v107
    %v122 = vpack.c.b16 %v110, %v109
    %v123 = vpack.c.b16 %v112, %v111
    %v124 = vpack.c.b16 %v114, %v113
    %v125 = vpack.c.b16 %v116, %v115
    %v126 = vpack.c.b16 %v118, %v117
    %135 = vmatpush.bf16.msra.mxu0 %v126
    %136 = vmatpush.bf16.msra.mxu0 %v125
    %137 = vmatpush.bf16.msra.mxu0 %v124
    %138 = vmatpush.bf16.msra.mxu0 %v123
    %139 = vmatpush.bf16.msra.mxu0 %v122
    %140 = vmatpush.bf16.msra.mxu0 %v121
    %141 = vmatpush.bf16.msra.mxu0 %v120
    %142 = vmatpush.bf16.msra.mxu0 %v119
    %143 = vmatmul.bf16.gmra.mxu0 %v66
    %v144 = vpop.f32.mrf.mxu0
    %v145 = vadd.f32 %v85, %v144
    %v146 = vpop.f32.mrf.mxu0
    %147 = vdwg.mxu0
    %v148 = vmax.f32 %v145, 0.0
    %v149 = vpack.c.bf16 %v148, %v148
    %v150 = vld [vmem:[#allocation7] sm:$0xf]
    %v151 = vld [vmem:[#allocation7 + $0x4] sm:$0xf]
    %v152 = vld [vmem:[#allocation7 + $0x8] sm:$0xf]
    %v153 = vld [vmem:[#allocation7 + $0xc] sm:$0xf]
    %v154 = vld [vmem:[#allocation7 + $0x10] sm:$0xf]
    %v155 = vld [vmem:[#allocation7 + $0x14] sm:$0xf]
    %v156 = vld [vmem:[#allocation7 + $0x18] sm:$0xf]
    %v157 = vld [vmem:[#allocation7 + $0x1c] sm:$0xf]
    %v158 = vld [vmem:[#allocation7 + $0x20] sm:$0xf]
    %v159 = vld [vmem:[#allocation7 + $0x24] sm:$0xf]
    %v160 = vld [vmem:[#allocation7 + $0x28] sm:$0xf]
    %v161 = vld [vmem:[#allocation7 + $0x2c] sm:$0xf]
    %v162 = vld [vmem:[#allocation7 + $0x30] sm:$0xf]
    %v163 = vld [vmem:[#allocation7 + $0x34] sm:$0xf]
    %v164 = vld [vmem:[#allocation7 + $0x38] sm:$0xf]
    %v165 = vld [vmem:[#allocation7 + $0x3c] sm:$0xf]
    %v166 = vld [vmem:[%s4] sm:$0x1]
    %v168 = vperm.slane %v166, 0
    %v186 = vunpack.c.l.b16 %v150
    %v187 = vunpack.c.l.b16 %v151
    %v188 = vunpack.c.l.b16 %v152
    %v189 = vunpack.c.l.b16 %v153
    %v190 = vunpack.c.l.b16 %v154
    %v191 = vunpack.c.l.b16 %v155
    %v192 = vunpack.c.l.b16 %v156
    %v193 = vunpack.c.l.b16 %v157
    %v194 = vunpack.c.l.b16 %v158
    %v195 = vunpack.c.l.b16 %v159
    %v196 = vunpack.c.l.b16 %v160
    %v197 = vunpack.c.l.b16 %v161
    %v198 = vunpack.c.l.b16 %v162
    %v199 = vunpack.c.l.b16 %v163
    %v200 = vunpack.c.l.b16 %v164
    %v201 = vunpack.c.l.b16 %v165
    %v202 = vpack.c.b16 %v187, %v186
    %v203 = vpack.c.b16 %v189, %v188
    %v204 = vpack.c.b16 %v191, %v190
    %v205 = vpack.c.b16 %v193, %v192
    %v206 = vpack.c.b16 %v195, %v194
    %v207 = vpack.c.b16 %v197, %v196
    %v208 = vpack.c.b16 %v199, %v198
    %v209 = vpack.c.b16 %v201, %v200
    %218 = vmatpush.bf16.msra.mxu0 %v209
    %219 = vmatpush.bf16.msra.mxu0 %v208
    %220 = vmatpush.bf16.msra.mxu0 %v207
    %221 = vmatpush.bf16.msra.mxu0 %v206
    %222 = vmatpush.bf16.msra.mxu0 %v205
    %223 = vmatpush.bf16.msra.mxu0 %v204
    %224 = vmatpush.bf16.msra.mxu0 %v203
    %225 = vmatpush.bf16.msra.mxu0 %v202
    %226 = vmatmul.bf16.gmra.mxu0 %v149
    %v227 = vpop.f32.mrf.mxu0
    %v228 = vadd.f32 %v168, %v227
    %v229 = vpop.f32.mrf.mxu0
    %230 = vdwg.mxu0
    %231 = vst [vmem:[#allocation8] sm:$0xff] %v228
    // Predicated region
    $region34: #{tpu_custom_call.1} parent=1 // pred_check
      _
    $region35: #{tpu_custom_call.1} parent=1 // pred_check_branch
      %233 = sbr.rel (0) target = $region37
    $region36: #{tpu_custom_call.1} parent=1 // pred_region
      %235 = vsyncadd [#allocation4], 0
      %s237 = sshll.u32 [#allocation8], 4
      %s238 = int_to_ptr.vmem [resolvable:$true] %s237
      %s239 = sshll.u32 %s5, 4
      %s240 = int_to_ptr.hbm [resolvable:$true] %s239
      %242 = dma.vmem_to_hbm [thread:$0]  %s238, 128, %s240, [#allocation4]
    $region37: #{tpu_custom_call.1} parent=1 // pred_fallthru
      _
    // Predicated region
    $region38: #{tpu_custom_call.1} parent=1 // pred_check
      _
    $region39: #{tpu_custom_call.1} parent=1 // pred_check_branch
      %244 = sbr.rel (0) target = $region41
    $region40: #{tpu_custom_call.1} parent=1 // pred_region
      %246 = dma.done [#allocation4], 128
    $region41: #{tpu_custom_call.1} parent=1 // pred_fallthru
      _
    %247 = vsyncpa [#allocation3], 1
    %248 = vsyncpa [#allocation6], 1
    %249 = vsyncpa [#allocation4], 1

</llo_original>
